<compile_context>
chip_gen: v7x
topology: tpu7x:2x2x1
jax: 0.10.0
libtpu: 0.0.40
codegen_flags: <defaults>
</compile_context>

<pallas_src>
import functools

import jax
import jax.numpy as jnp
from jax.experimental import pallas as pl
from jax.experimental.pallas import tpu as pltpu


def _round_up(x, m):
    return (x + m - 1) // m * m


def bp2v_kernel(idx_ref, m_ref, out_ref, *, n_b):
    """idx_ref: (TB, 2) int32  [batter_idx, pitcher_idx]   (raw, un-offset)
       m_ref  : (N_pad, O_pad) f32 folded sigmoid+FC(+bias) table
       out_ref: (TB, O_pad)    f32
    """
    idx = idx_ref[...]                                   # (TB, 2)
    tb = idx.shape[0]
    n_vocab = m_ref.shape[0]                             # N_pad (multiple of 128)

    b_col = idx[:, 0:1]                                  # (TB, 1)
    p_col = idx[:, 1:2] + n_b                            # (TB, 1), offset in-kernel

    # One compare per lane: batter slots occupy lanes [0, n_b), pitcher slots
    # occupy lanes [n_b, n_b+n_p). The lane<n_b mask is a compile-time constant.
    lane = jax.lax.broadcasted_iota(jnp.int32, (tb, n_vocab), 1)
    target = jnp.where(lane < n_b, b_col, p_col)         # (TB, n_vocab)
    onehot = jnp.where(lane == target, 1.0, 0.0).astype(jnp.float32)

    # Single MXU matmul: gather + sigmoid + FC + bias all folded into m_ref.
    out_ref[...] = jnp.dot(onehot, m_ref[...], preferred_element_type=jnp.float32)


def prepare_params(batter_table, pitcher_table, fc_weight, fc_bias,
                   *, n_pad_to=256, o_pad_to=128):
    """One-time (hoisted) parameter folding.

    fc_weight: (O, 2E), fc_bias: (O,).
    Returns M of shape (N_pad, O_pad) with
      M[i]       = sigmoid(batter_table[i])  @ fc_weight[:, :E].T + fc_bias
      M[n_b + j] = sigmoid(pitcher_table[j]) @ fc_weight[:, E:].T
    and zero padding rows/lanes elsewhere.
    """
    n_b, E = batter_table.shape
    n_p, _ = pitcher_table.shape
    O = fc_weight.shape[0]
    O_pad = _round_up(O, o_pad_to)
    N_pad = _round_up(_round_up(n_b + n_p, n_pad_to), 128)

    wf = fc_weight.astype(jnp.float32)
    mb = jax.nn.sigmoid(batter_table.astype(jnp.float32)) @ wf[:, :E].T \
        + fc_bias.astype(jnp.float32)                         # (n_b, O)
    mp = jax.nn.sigmoid(pitcher_table.astype(jnp.float32)) @ wf[:, E:].T  # (n_p, O)

    m = jnp.zeros((N_pad, O_pad), jnp.float32)
    m = m.at[:n_b, :O].set(mb)
    m = m.at[n_b:n_b + n_p, :O].set(mp)
    return m


@functools.partial(jax.jit, static_argnames=("n_b", "n_out"))
def bp2v_forward(batter_idxs, pitcher_idxs, m_table, *, n_b, n_out):
    B = batter_idxs.shape[0]
    N_pad, O_pad = m_table.shape

    # Single packed (B, 2) index operand; pitcher offset is applied in-kernel.
    idx = jnp.stack([batter_idxs.astype(jnp.int32),
                     pitcher_idxs.astype(jnp.int32)], axis=1)          # (B, 2)

    # Batch tiling: one block for small B; for large B use big tiles (per-step
    # overhead ~0.35us, resident VMEM tiny) but keep >=2 grid steps so the
    # parallel axis can shard across v7x's two TensorCores.
    if B <= 256:
        TB = _round_up(B, 8)
    else:
        TB = min(1024, _round_up(pl.cdiv(B, 2), 8))
    B_pad = _round_up(B, TB)
    if B_pad != B:
        idx = jnp.pad(idx, ((0, B_pad - B), (0, 0)))
    grid = (B_pad // TB,)

    cost = pl.CostEstimate(
        flops=2 * B_pad * N_pad * O_pad,
        transcendentals=0,
        bytes_accessed=(idx.size * 4 + m_table.size * 4 + B_pad * O_pad * 4),
    )

    out = pl.pallas_call(
        functools.partial(bp2v_kernel, n_b=n_b),
        out_shape=jax.ShapeDtypeStruct((B_pad, O_pad), jnp.float32),
        grid=grid,
        in_specs=[
            pl.BlockSpec((TB, 2), lambda i: (i, 0)),
            pl.BlockSpec((N_pad, O_pad), lambda i: (0, 0)),
        ],
        out_specs=pl.BlockSpec((TB, O_pad), lambda i: (i, 0)),
        compiler_params=pltpu.CompilerParams(dimension_semantics=("parallel",)),
        cost_estimate=cost,
    )(idx, m_table)

    # TODO(synk): for v5e/writeback-bound large-batch callers, return the padded
    # (B_pad, O_pad) buffer and let the consumer slice/fuse instead.
    return out[:B, :n_out]


if __name__ == "__main__":
    n_batters = n_pitchers = 100
    embedding_dim = 9
    n_outcomes = 20
    batch_size = 32

    key = jax.random.PRNGKey(0)
    k1, k2, k3, k4, k5, k6 = jax.random.split(key, 6)

    # nn.Embedding init: N(0, 1)
    batter_table = jax.random.normal(k1, (n_batters, embedding_dim), jnp.float32)
    pitcher_table = jax.random.normal(k2, (n_pitchers, embedding_dim), jnp.float32)

    # nn.Linear init: U(-1/sqrt(fan_in), 1/sqrt(fan_in)), weight shape (O, 2E)
    fan_in = 2 * embedding_dim
    bound = 1.0 / (fan_in ** 0.5)
    fc_weight = jax.random.uniform(k3, (n_outcomes, fan_in), jnp.float32,
                                   minval=-bound, maxval=bound)
    fc_bias = jax.random.uniform(k4, (n_outcomes,), jnp.float32,
                                 minval=-bound, maxval=bound)

    batter_idxs = jax.random.randint(k5, (batch_size,), 0, n_batters, jnp.int32)
    pitcher_idxs = jax.random.randint(k6, (batch_size,), 0, n_pitchers, jnp.int32)

    # One-time parameter folding (hoisted out of the per-call hot path).
    m_table = prepare_params(batter_table, pitcher_table, fc_weight, fc_bias)
    m_table = jax.block_until_ready(m_table)

    out = bp2v_forward(batter_idxs, pitcher_idxs, m_table,
                       n_b=n_batters, n_out=n_outcomes)
    out = jax.block_until_ready(out)

    # Pure-JAX reference (same math as the PyTorch forward).
    cat = jnp.concatenate([batter_table[batter_idxs],
                           pitcher_table[pitcher_idxs]], axis=1)
    ref = jax.nn.sigmoid(cat) @ fc_weight.T + fc_bias
    assert out.shape == (batch_size, n_outcomes)
    assert jnp.allclose(out, ref, atol=1e-5, rtol=1e-5)

    print("KERNEL_OK")
</pallas_src>

<mosaic_0001>
module attributes {stable_mosaic.version = 11 : i64} {
  func.func @bp2v_kernel(%arg0: i32, %arg1: memref<32x2xi32, #tpu.memory_space<vmem>>, %arg2: memref<256x128xf32, #tpu.memory_space<vmem>>, %arg3: memref<32x128xf32, #tpu.memory_space<vmem>>) attributes {dimension_semantics = [#tpu.dimension_semantics<parallel>], iteration_bounds = array<i64: 1>, scalar_prefetch = 0 : i64, scratch_operands = 0 : i64, tpu.core_type = #tpu.core_type<tc>, window_params = [{transform_indices = @transform_0, window_bounds = array<i64: 32, 2>}, {pipeline_mode = #tpu.pipeline_mode<synchronous>, transform_indices = @transform_1, window_bounds = array<i64: 256, 128>}, {transform_indices = @transform_2, window_bounds = array<i64: 32, 128>}]} {
    %c0 = arith.constant 0 : index
    %c0_0 = arith.constant 0 : index
    %0 = vector.load %arg1[%c0, %c0_0] : memref<32x2xi32, #tpu.memory_space<vmem>>, vector<32x2xi32>
    %1 = vector.extract_strided_slice %0 {offsets = [0, 0], sizes = [32, 1], strides = [1, 1]} : vector<32x2xi32> to vector<32x1xi32>
    %2 = vector.extract_strided_slice %0 {offsets = [0, 1], sizes = [32, 1], strides = [1, 1]} : vector<32x2xi32> to vector<32x1xi32>
    %c100_i32 = arith.constant 100 : i32
    %3 = vector.broadcast %c100_i32 : i32 to vector<32x1xi32>
    %4 = arith.addi %2, %3 : vector<32x1xi32>
    %5 = tpu.iota {dimensions = array<i32: 1>} : vector<32x256xi32>
    %c100_i32_1 = arith.constant 100 : i32
    %6 = vector.broadcast %c100_i32_1 : i32 to vector<32x256xi32>
    %7 = arith.cmpi slt, %5, %6 : vector<32x256xi32>
    %8 = vector.shape_cast %1 : vector<32x1xi32> to vector<32x1xi32>
    %9 = vector.broadcast %8 : vector<32x1xi32> to vector<32x256xi32>
    %10 = vector.shape_cast %4 : vector<32x1xi32> to vector<32x1xi32>
    %11 = vector.broadcast %10 : vector<32x1xi32> to vector<32x256xi32>
    %12 = arith.select %7, %9, %11 : vector<32x256xi1>, vector<32x256xi32>
    %13 = arith.cmpi eq, %5, %12 : vector<32x256xi32>
    %cst = arith.constant 1.000000e+00 : f32
    %cst_2 = arith.constant 0.000000e+00 : f32
    %14 = vector.broadcast %cst : f32 to vector<32x256xf32>
    %15 = vector.broadcast %cst_2 : f32 to vector<32x256xf32>
    %16 = arith.select %13, %14, %15 : vector<32x256xi1>, vector<32x256xf32>
    %c0_3 = arith.constant 0 : index
    %c0_4 = arith.constant 0 : index
    %17 = vector.load %arg2[%c0_3, %c0_4] : memref<256x128xf32, #tpu.memory_space<vmem>>, vector<256x128xf32>
    %cst_5 = arith.constant dense<0.000000e+00> : vector<32x128xf32>
    %18 = tpu.matmul %16, %17, %cst_5 {dimension_numbers = #tpu.dot_dimension_numbers<[1], [0], [0], [1], [0, 0, 1, 1], [], []>} : vector<32x256xf32>, vector<256x128xf32>, vector<32x128xf32> -> vector<32x128xf32>
    %c0_6 = arith.constant 0 : index
    %c0_7 = arith.constant 0 : index
    %19 = vector.load %arg3[%c0_6, %c0_7] : memref<32x128xf32, #tpu.memory_space<vmem>>, vector<32x128xf32>
    tpu.vector_store %arg3[%c0_6, %c0_7], %18 {strides = array<i32>} : memref<32x128xf32, #tpu.memory_space<vmem>>, vector<32x128xf32>,
    return
  }
  func.func @transform_0(%arg0: i32) -> (i32, i32) {
    %c0_i32 = arith.constant 0 : i32
    %c0_i32_0 = arith.constant 0 : i32
    return %arg0, %c0_i32 : i32, i32
  }
  func.func @transform_1(%arg0: i32) -> (i32, i32) {
    %c0_i32 = arith.constant 0 : i32
    %c0_i32_0 = arith.constant 0 : i32
    %c0_i32_1 = arith.constant 0 : i32
    return %c0_i32, %c0_i32_0 : i32, i32
  }
  func.func @transform_2(%arg0: i32) -> (i32, i32) {
    %c0_i32 = arith.constant 0 : i32
    %c0_i32_0 = arith.constant 0 : i32
    return %arg0, %c0_i32 : i32, i32
  }
}

</mosaic_0001>

<llo_original>
// kernel: bp2v_forward.1
$region0: #{bp2v_forward.1}
  #allocation0 [shape = 'u32[]', space=smem, size = 0x4, offset = 0x4, fixed_abs, tag = 'smem constant byte address 0x4 - core index']
  #allocation1 [shape = 'u32[144,128]{1,0:T(1,128)}', space=vmem, size = 0x12000, scoped, tag = 'internal scratch']
  %s0 = inlined_call_operand.vmem [shape: s32[32,2], index: 0, kind: input, shape index: {}]
  %s1 = inlined_call_operand.hbm [shape: f32[256,128], index: 1, kind: input, shape index: {}]
  %s2 = inlined_call_operand.vmem [shape: f32[32,128], index: 2, kind: output, shape index: {}]
  %s3 = sld [smem:[#allocation0]]
  $region22: #{bp2v_forward.1} parent=0
    _
  %s5 = ssub.s32 1, %s3
  %s6 = scalar_select 0, %s5, %s3
  $region1: #{bp2v_forward.1} parent=0
    #allocation2 [shape = 'u8[131072]{0}', space=vmem, size = 0x20000, scoped, tag = 'input window, operand 1, single buffered']
    #allocation3 [shape = 's32[1]{0}', space=sflag, size = 0x4, scoped, tag = 'scoped memory for bp2v_forward.1']
    %7 = vsyncpa [#allocation3], 0
    // Predicated region
    $region2: #{bp2v_forward.1} parent=1 // pred_check
      _
    $region3: #{bp2v_forward.1} parent=1 // pred_check_branch
      %9 = sbr.rel (0) target = $region5
    $region4: #{bp2v_forward.1} parent=1 // pred_region
      _
    $region5: #{bp2v_forward.1} parent=1 // pred_fallthru
      _
    // Predicated region
    $region6: #{bp2v_forward.1} parent=1 // pred_check
      _
    $region7: #{bp2v_forward.1} parent=1 // pred_check_branch
      %11 = sbr.rel (0) target = $region9
    $region8: #{bp2v_forward.1} parent=1 // pred_region
      %s13 = ssub.s32 4096, 4096
      %14 = vsyncadd [#allocation3], %s13
      %s15 = sshll.u32 [#allocation2], 4
      %s16 = int_to_ptr.vmem [resolvable:$true] %s15
      %21 = dma.hbm_to_vmem [thread:$0]  %s1, 4096, %s16, [#allocation3], 128, 128, 8
    $region9: #{bp2v_forward.1} parent=1 // pred_fallthru
      _
    // Predicated region
    $region10: #{bp2v_forward.1} parent=1 // pred_check
      _
    $region11: #{bp2v_forward.1} parent=1 // pred_check_branch
      %23 = sbr.rel (0) target = $region13
    $region12: #{bp2v_forward.1} parent=1 // pred_region
      %24 = dma.done [#allocation3], 4096
    $region13: #{bp2v_forward.1} parent=1 // pred_fallthru
      _
    %v25 = vld [vmem:[%s0] sm:$0xff]
    %v26 = vld [vmem:[%s0 + $0x8] sm:$0xff]
    %v27 = vld [vmem:[%s0 + $0x10] sm:$0xff]
    %v28 = vld [vmem:[%s0 + $0x18] sm:$0xff]
    %v29 = vadd.s32 %v25, 100
    %v30 = vadd.s32 %v26, 100
    %v31 = vadd.s32 %v27, 100
    %v32 = vadd.s32 %v28, 100
    %v33 = vlaneseq
    %v34 = vand.u32 %v33, 127
    %v35 = vadd.s32 %v34, 128
    %vm36 = vcmp.lt.s32.totalorder %v34, 100
    %vm37 = vcmp.lt.s32.totalorder %v35, 100
    %38 = vset.pattern.permute.xlu0 0
    %39 = vperm.xlu0 %38, %v25
    %v40 = vpop.permute.xlu0 %39
    %41 = vset.pattern.permute.xlu0 0
    %42 = vperm.xlu0 %41, %v26
    %v43 = vpop.permute.xlu0 %42
    %44 = vset.pattern.permute.xlu0 0
    %45 = vperm.xlu0 %44, %v27
    %v46 = vpop.permute.xlu0 %45
    %47 = vset.pattern.permute.xlu0 0
    %48 = vperm.xlu0 %47, %v28
    %v49 = vpop.permute.xlu0 %48
    %50 = vset.pattern.permute.xlu0 1
    %51 = vperm.xlu0 %50, %v29
    %v52 = vpop.permute.xlu0 %51
    %53 = vset.pattern.permute.xlu0 1
    %54 = vperm.xlu0 %53, %v30
    %v55 = vpop.permute.xlu0 %54
    %56 = vset.pattern.permute.xlu0 1
    %57 = vperm.xlu0 %56, %v31
    %v58 = vpop.permute.xlu0 %57
    %59 = vset.pattern.permute.xlu0 1
    %60 = vperm.xlu0 %59, %v32
    %v61 = vpop.permute.xlu0 %60
    %v62 = vsel %vm36, %v40, %v52
    %v63 = vsel %vm37, %v40, %v52
    %v64 = vsel %vm36, %v43, %v55
    %v65 = vsel %vm37, %v43, %v55
    %v66 = vsel %vm36, %v46, %v58
    %v67 = vsel %vm37, %v46, %v58
    %v68 = vsel %vm36, %v49, %v61
    %v69 = vsel %vm37, %v49, %v61
    %vm70 = vcmp.eq.s32.totalorder %v34, %v62
    %vm71 = vcmp.eq.s32.totalorder %v35, %v63
    %vm72 = vcmp.eq.s32.totalorder %v34, %v64
    %vm73 = vcmp.eq.s32.totalorder %v35, %v65
    %vm74 = vcmp.eq.s32.totalorder %v34, %v66
    %vm75 = vcmp.eq.s32.totalorder %v35, %v67
    %vm76 = vcmp.eq.s32.totalorder %v34, %v68
    %vm77 = vcmp.eq.s32.totalorder %v35, %v69
    %v78 = vsel %vm70, 1.0, 0.0
    %v79 = vsel %vm71, 1.0, 0.0
    %v80 = vsel %vm72, 1.0, 0.0
    %v81 = vsel %vm73, 1.0, 0.0
    %v82 = vsel %vm74, 1.0, 0.0
    %v83 = vsel %vm75, 1.0, 0.0
    %v84 = vsel %vm76, 1.0, 0.0
    %v85 = vsel %vm77, 1.0, 0.0
    %v86 = vld [vmem:[#allocation2] sm:$0xff]
    %v87 = vld [vmem:[#allocation2 + $0x8] sm:$0xff]
    %v88 = vld [vmem:[#allocation2 + $0x10] sm:$0xff]
    %v89 = vld [vmem:[#allocation2 + $0x18] sm:$0xff]
    %v90 = vld [vmem:[#allocation2 + $0x20] sm:$0xff]
    %v91 = vld [vmem:[#allocation2 + $0x28] sm:$0xff]
    %v92 = vld [vmem:[#allocation2 + $0x30] sm:$0xff]
    %v93 = vld [vmem:[#allocation2 + $0x38] sm:$0xff]
    %v94 = vld [vmem:[#allocation2 + $0x40] sm:$0xff]
    %v95 = vld [vmem:[#allocation2 + $0x48] sm:$0xff]
    %v96 = vld [vmem:[#allocation2 + $0x50] sm:$0xff]
    %v97 = vld [vmem:[#allocation2 + $0x58] sm:$0xff]
    %v98 = vld [vmem:[#allocation2 + $0x60] sm:$0xff]
    %v99 = vld [vmem:[#allocation2 + $0x68] sm:$0xff]
    %v100 = vld [vmem:[#allocation2 + $0x70] sm:$0xff]
    %v101 = vld [vmem:[#allocation2 + $0x78] sm:$0xff]
    %v102 = vld [vmem:[#allocation2 + $0x80] sm:$0xff]
    %v103 = vld [vmem:[#allocation2 + $0x88] sm:$0xff]
    %v104 = vld [vmem:[#allocation2 + $0x90] sm:$0xff]
    %v105 = vld [vmem:[#allocation2 + $0x98] sm:$0xff]
    %v106 = vld [vmem:[#allocation2 + $0xa0] sm:$0xff]
    %v107 = vld [vmem:[#allocation2 + $0xa8] sm:$0xff]
    %v108 = vld [vmem:[#allocation2 + $0xb0] sm:$0xff]
    %v109 = vld [vmem:[#allocation2 + $0xb8] sm:$0xff]
    %v110 = vld [vmem:[#allocation2 + $0xc0] sm:$0xff]
    %v111 = vld [vmem:[#allocation2 + $0xc8] sm:$0xff]
    %v112 = vld [vmem:[#allocation2 + $0xd0] sm:$0xff]
    %v113 = vld [vmem:[#allocation2 + $0xd8] sm:$0xff]
    %v114 = vld [vmem:[#allocation2 + $0xe0] sm:$0xff]
    %v115 = vld [vmem:[#allocation2 + $0xe8] sm:$0xff]
    %v116 = vld [vmem:[#allocation2 + $0xf0] sm:$0xff]
    %v117 = vld [vmem:[#allocation2 + $0xf8] sm:$0xff]
    %118 = vmatprep.subr.mxu0 0.0
    %119 = vmatpush1.msra.mxu0 %v86
    %120 = vmatprep.subr.mxu0 0.0
    %121 = vmatpush1.msra.mxu0 %v87
    %122 = vmatprep.subr.mxu0 0.0
    %123 = vmatpush1.msra.mxu0 %v88
    %124 = vmatprep.subr.mxu0 0.0
    %125 = vmatpush1.msra.mxu0 %v89
    %126 = vmatprep.subr.mxu0 0.0
    %127 = vmatpush1.msra.mxu0 %v90
    %128 = vmatprep.subr.mxu0 0.0
    %129 = vmatpush1.msra.mxu0 %v91
    %130 = vmatprep.subr.mxu0 0.0
    %131 = vmatpush1.msra.mxu0 %v92
    %132 = vmatprep.subr.mxu0 0.0
    %133 = vmatpush1.msra.mxu0 %v93
    %134 = vmatprep.subr.mxu0 0.0
    %135 = vmatpush1.msra.mxu0 %v94
    %136 = vmatprep.subr.mxu0 0.0
    %137 = vmatpush1.msra.mxu0 %v95
    %138 = vmatprep.subr.mxu0 0.0
    %139 = vmatpush1.msra.mxu0 %v96
    %140 = vmatprep.subr.mxu0 0.0
    %141 = vmatpush1.msra.mxu0 %v97
    %142 = vmatprep.subr.mxu0 0.0
    %143 = vmatpush1.msra.mxu0 %v98
    %144 = vmatprep.subr.mxu0 0.0
    %145 = vmatpush1.msra.mxu0 %v99
    %146 = vmatprep.subr.mxu0 0.0
    %147 = vmatpush1.msra.mxu0 %v100
    %148 = vmatprep.subr.mxu0 0.0
    %149 = vmatpush1.msra.mxu0 %v101
    %150 = vmatprep.subr.mxu0 0.0
    %151 = vmatpush1.msra.mxu0 %v102
    %152 = vmatprep.subr.mxu0 0.0
    %153 = vmatpush1.msra.mxu0 %v103
    %154 = vmatprep.subr.mxu0 0.0
    %155 = vmatpush1.msra.mxu0 %v104
    %156 = vmatprep.subr.mxu0 0.0
    %157 = vmatpush1.msra.mxu0 %v105
    %158 = vmatprep.subr.mxu0 0.0
    %159 = vmatpush1.msra.mxu0 %v106
    %160 = vmatprep.subr.mxu0 0.0
    %161 = vmatpush1.msra.mxu0 %v107
    %162 = vmatprep.subr.mxu0 0.0
    %163 = vmatpush1.msra.mxu0 %v108
    %164 = vmatprep.subr.mxu0 0.0
    %165 = vmatpush1.msra.mxu0 %v109
    %166 = vmatprep.subr.mxu0 0.0
    %167 = vmatpush1.msra.mxu0 %v110
    %168 = vmatprep.subr.mxu0 0.0
    %169 = vmatpush1.msra.mxu0 %v111
    %170 = vmatprep.subr.mxu0 0.0
    %171 = vmatpush1.msra.mxu0 %v112
    %172 = vmatprep.subr.mxu0 0.0
    %173 = vmatpush1.msra.mxu0 %v113
    %174 = vmatprep.subr.mxu0 0.0
    %175 = vmatpush1.msra.mxu0 %v114
    %176 = vmatprep.subr.mxu0 0.0
    %177 = vmatpush1.msra.mxu0 %v115
    %178 = vmatprep.subr.mxu0 0.0
    %179 = vmatpush1.msra.mxu0 %v116
    %180 = vmatprep.subr.mxu0 0.0
    %181 = vmatpush1.msra.mxu0 %v117
    %182 = vmatprep.mubr.f32.mxu0 %v79
    %183 = vmatmul.mubr.f32.gmra.mrb[0].mxu0 %v78
    %v184 = vpop.f32.mrb[0].mxu0
    %v185 = vadd.f32 0.0, %v184
    %v186 = vpop.f32.mrb[0].mxu0
    %187 = vmatprep.mubr.f32.mxu0 %v81
    %188 = vmatmul.mubr.f32.gmra.mrb[0].mxu0 %v80
    %v189 = vpop.f32.mrb[0].mxu0
    %v190 = vadd.f32 0.0, %v189
    %v191 = vpop.f32.mrb[0].mxu0
    %192 = vmatprep.mubr.f32.mxu0 %v83
    %193 = vmatmul.mubr.f32.gmra.mrb[0].mxu0 %v82
    %v194 = vpop.f32.mrb[0].mxu0
    %v195 = vadd.f32 0.0, %v194
    %v196 = vpop.f32.mrb[0].mxu0
    %197 = vmatprep.mubr.f32.mxu0 %v85
    %198 = vmatmul.mubr.f32.gmra.mrb[0].mxu0 %v84
    %v199 = vpop.f32.mrb[0].mxu0
    %v200 = vadd.f32 0.0, %v199
    %v201 = vpop.f32.mrb[0].mxu0
    %202 = vdwg.mxu0
    %203 = vst [vmem:[%s2] sm:$0xff] %v185
    %204 = vst [vmem:[%s2 + $0x8] sm:$0xff] %v190
    %205 = vst [vmem:[%s2 + $0x10] sm:$0xff] %v195
    %206 = vst [vmem:[%s2 + $0x18] sm:$0xff] %v200
    // Predicated region
    $region14: #{bp2v_forward.1} parent=1 // pred_check
      _
    $region15: #{bp2v_forward.1} parent=1 // pred_check_branch
      %208 = sbr.rel (0) target = $region17
    $region16: #{bp2v_forward.1} parent=1 // pred_region
      _
    $region17: #{bp2v_forward.1} parent=1 // pred_fallthru
      _
    // Predicated region
    $region18: #{bp2v_forward.1} parent=1 // pred_check
      _
    $region19: #{bp2v_forward.1} parent=1 // pred_check_branch
      %210 = sbr.rel (0) target = $region21
    $region20: #{bp2v_forward.1} parent=1 // pred_region
      _
    $region21: #{bp2v_forward.1} parent=1 // pred_fallthru
      _
    %211 = vsyncpa [#allocation3], 1

</llo_original>
